<compile_context>
chip_gen: v7x
topology: tpu7x:2x2x1
jax: 0.10.0
libtpu: 0.0.40
codegen_flags: <defaults>
</compile_context>

<pallas_src>
import functools
import math

import jax
import jax.numpy as jnp
from jax import lax
from jax.experimental import pallas as pl
from jax.experimental.pallas import tpu as pltpu

_EPS = 1e-8
_INV_SQRT2 = 1.0 / math.sqrt(2.0)
_INV_SQRT_2PI = 1.0 / math.sqrt(2.0 * math.pi)
_TANH_CDF_C0 = math.sqrt(2.0 / math.pi)
_TANH_CDF_C1 = 0.044715


def _urelu_kernel(mean_ref, var_ref, relu_ref, cov_ref, *, approx_cdf):
    mean = mean_ref[...].astype(jnp.float32)
    var = var_ref[...].astype(jnp.float32)

    v = var + _EPS
    inv_std = lax.rsqrt(v)                 # one EUP op instead of sqrt + divide
    std = v * inv_std                      # == sqrt(var + eps)
    z = mean * inv_std * _INV_SQRT2

    if approx_cdf:
        # tanh-based normal CDF: moves erf's ~20-op VPU polynomial onto the
        # otherwise-idle EUP slot (v7x VALU-bound regime).  ~1e-3 abs error.
        x = mean * inv_std
        h = 0.5 * (1.0 + jnp.tanh(_TANH_CDF_C0 * (x + _TANH_CDF_C1 * x * x * x)))
    else:
        h = 0.5 * (1.0 + lax.erf(z))       # P(X > 0), exact path

    gauss = _INV_SQRT_2PI * jnp.exp(-(z * z))
    t4 = gauss * std
    mean_relu = mean * h + t4              # E[relu(X)]  (== term3 + term4)
    # term1 + term2 == var*h + mean*mean_relu, hence:
    cov = var * h + mean_relu * (mean - mean_relu)

    relu_ref[...] = jnp.maximum(mean, 0.0).astype(relu_ref.dtype)
    cov_ref[...] = jnp.maximum(cov, 0.0).astype(cov_ref.dtype)


def _tpu_caps():
    """Best-effort chip probe; conservative fallback if probing fails."""
    kind = ""
    vmem_bytes = None
    try:
        kind = jax.devices()[0].device_kind.lower()
    except Exception:
        pass
    try:
        vmem_bytes = getattr(pltpu.get_tpu_info(), "vmem_capacity_bytes", None)
    except Exception:
        pass
    is_v7 = ("v7" in kind or "tpu7" in kind
             or (vmem_bytes is not None and vmem_bytes <= 80 * (1 << 20)))
    if is_v7:
        # 2 TensorCores, 64 MiB VMEM/TC, ~3.2 TB/s HBM per TC: bigger blocks
        # (4 arrays x 2 bufs x 2 MiB = 16 MiB) + explicit scoped-VMEM bump.
        return {"num_cores": 2, "max_block_elems": 512 * 1024,
                "vmem_limit_bytes": 48 * (1 << 20)}
    # v5e / v6e: single TC, scoped-VMEM default 16/32 MiB -> keep 8 MiB footprint.
    return {"num_cores": 1, "max_block_elems": 256 * 1024,
            "vmem_limit_bytes": None}


def _round_up(x, m):
    return ((x + m - 1) // m) * m


def _plan(n, dtype, caps):
    """Pick (block_rows, lanes, pad, rows_total) for a flat array of n elems."""
    itemsize = jnp.dtype(dtype).itemsize
    min_rows = 8 * max(1, 4 // itemsize)   # full native sublane packing

    lanes = 128
    for cand in (512, 256):                # prefer wide, lane-dense blocks
        if n % cand == 0:
            lanes = cand
            break
    pad = (-n) % lanes                     # only lane-ragged sizes pad (<128 elems)
    rows_total = (n + pad) // lanes

    if rows_total <= min_rows:
        # One block equal to the full array (legal even if rows % 8 != 0).
        return rows_total, lanes, pad, rows_total

    cap = caps["max_block_elems"] // lanes
    cap = min(cap, _round_up(rows_total, min_rows))
    if caps["num_cores"] > 1 and rows_total >= 2 * min_rows:
        # Keep >= 2 grid steps so both TensorCores get work under ("parallel",).
        cap = min(cap, max(min_rows, (rows_total // (2 * min_rows)) * min_rows))

    rows = min_rows
    while rows * 2 <= cap:
        rows *= 2
    return rows, lanes, pad, rows_total


def urelu(mean, var, *, approx_cdf=False):
    """Pallas TPU implementation of UReLU.forward((mean, var))."""
    assert mean.shape == var.shape
    orig_shape = mean.shape
    dtype = mean.dtype
    n = mean.size

    caps = _tpu_caps()
    rows, lanes, pad, rows_total = _plan(n, dtype, caps)

    mean_flat = mean.reshape(-1)
    var_flat = var.reshape(-1)
    if pad:
        # Lane-ragged element count only: pad < `lanes` elements; var=1 keeps
        # the padded lanes numerically tame.  Sliced off below.
        mean_flat = jnp.pad(mean_flat, (0, pad))
        var_flat = jnp.pad(var_flat, (0, pad), constant_values=1.0)

    mean2d = mean_flat.reshape(rows_total, lanes)   # free reshape (contiguous)
    var2d = var_flat.reshape(rows_total, lanes)

    grid = (pl.cdiv(rows_total, rows),)             # edge block masked by Pallas
    block = pl.BlockSpec((rows, lanes), lambda i: (i, 0))

    # Advisory only; erf lowers to a VPU polynomial so VALU work is understated.
    cost = pl.CostEstimate(
        flops=22 * n,
        transcendentals=3 * n,
        bytes_accessed=4 * n * jnp.dtype(dtype).itemsize,
    )

    relu_out, cov_out = pl.pallas_call(
        functools.partial(_urelu_kernel, approx_cdf=approx_cdf),
        out_shape=(
            jax.ShapeDtypeStruct((rows_total, lanes), dtype),
            jax.ShapeDtypeStruct((rows_total, lanes), dtype),
        ),
        grid_spec=pltpu.PrefetchScalarGridSpec(
            num_scalar_prefetch=0,
            grid=grid,
            in_specs=[block, block],
            out_specs=[block, block],
        ),
        compiler_params=pltpu.CompilerParams(
            dimension_semantics=("parallel",),
            vmem_limit_bytes=caps["vmem_limit_bytes"]),
        cost_estimate=cost,
    )(mean2d, var2d)

    if pad:
        relu_out = relu_out.reshape(-1)[:n]
        cov_out = cov_out.reshape(-1)[:n]
    return relu_out.reshape(orig_shape), cov_out.reshape(orig_shape)


def _urelu_ref(mean, var):
    """Pure-JAX reference mirroring the PyTorch module."""
    std = jnp.sqrt(var + _EPS)
    z = mean / (math.sqrt(2.0) * std)
    erf_z = lax.erf(z)
    exp_z2 = jnp.exp(-(z ** 2))
    term1 = 0.5 * (var + mean ** 2) * (erf_z + 1.0)
    term2 = mean * std * _INV_SQRT_2PI * exp_z2
    term3 = mean / 2.0 * (1.0 + erf_z)
    term4 = _INV_SQRT_2PI * std * exp_z2
    cov = jnp.maximum(term1 + term2 - (term3 + term4) ** 2, 0.0)
    return jnp.maximum(mean, 0.0), cov


if __name__ == "__main__":
    key = jax.random.PRNGKey(0)
    k_mean, k_var = jax.random.split(key)

    # NCHW input moments: batch=2, channels=4, spatial=16x16
    shape = (2, 4, 16, 16)
    mean = jax.random.normal(k_mean, shape, dtype=jnp.float32)
    var = jax.random.uniform(k_var, shape, dtype=jnp.float32,
                             minval=0.1, maxval=2.0)

    relu_m, cov = urelu(mean, var)
    jax.block_until_ready((relu_m, cov))

    relu_ref, cov_ref = _urelu_ref(mean, var)
    assert jnp.allclose(relu_m, relu_ref, atol=1e-5, rtol=1e-5)
    assert jnp.allclose(cov, cov_ref, atol=1e-5, rtol=1e-5)

    print("KERNEL_OK")
</pallas_src>

<mosaic_0001>
module attributes {stable_mosaic.version = 11 : i64} {
  func.func @_urelu_kernel(%arg0: i32, %arg1: memref<4x512xf32, #tpu.memory_space<vmem>>, %arg2: memref<4x512xf32, #tpu.memory_space<vmem>>, %arg3: memref<4x512xf32, #tpu.memory_space<vmem>>, %arg4: memref<4x512xf32, #tpu.memory_space<vmem>>) attributes {dimension_semantics = [#tpu.dimension_semantics<parallel>], iteration_bounds = array<i64: 1>, scalar_prefetch = 0 : i64, scratch_operands = 0 : i64, tpu.core_type = #tpu.core_type<tc>, window_params = [{transform_indices = @transform_0, window_bounds = array<i64: 4, 512>}, {transform_indices = @transform_1, window_bounds = array<i64: 4, 512>}, {transform_indices = @transform_2, window_bounds = array<i64: 4, 512>}, {transform_indices = @transform_3, window_bounds = array<i64: 4, 512>}]} {
    %c0 = arith.constant 0 : index
    %c0_0 = arith.constant 0 : index
    %0 = vector.load %arg1[%c0, %c0_0] : memref<4x512xf32, #tpu.memory_space<vmem>>, vector<4x512xf32>
    %c0_1 = arith.constant 0 : index
    %c0_2 = arith.constant 0 : index
    %1 = vector.load %arg2[%c0_1, %c0_2] : memref<4x512xf32, #tpu.memory_space<vmem>>, vector<4x512xf32>
    %cst = arith.constant 9.99999993E-9 : f32
    %2 = vector.broadcast %cst : f32 to vector<4x512xf32>
    %3 = arith.addf %1, %2 : vector<4x512xf32>
    %4 = math.rsqrt %3 : vector<4x512xf32>
    %5 = arith.mulf %3, %4 : vector<4x512xf32>
    %6 = arith.mulf %0, %4 : vector<4x512xf32>
    %cst_3 = arith.constant 0.707106769 : f32
    %7 = vector.broadcast %cst_3 : f32 to vector<4x512xf32>
    %8 = arith.mulf %6, %7 : vector<4x512xf32>
    %9 = math.erf %8 : vector<4x512xf32>
    %cst_4 = arith.constant 1.000000e+00 : f32
    %10 = vector.broadcast %cst_4 : f32 to vector<4x512xf32>
    %11 = arith.addf %10, %9 : vector<4x512xf32>
    %cst_5 = arith.constant 5.000000e-01 : f32
    %12 = vector.broadcast %cst_5 : f32 to vector<4x512xf32>
    %13 = arith.mulf %12, %11 : vector<4x512xf32>
    %14 = arith.mulf %8, %8 : vector<4x512xf32>
    %cst_6 = arith.constant 0.000000e+00 : f32
    %15 = vector.broadcast %cst_6 : f32 to vector<4x512xf32>
    %16 = arith.subf %15, %14 : vector<4x512xf32>
    %17 = math.exp %16 : vector<4x512xf32>
    %cst_7 = arith.constant 0.398942292 : f32
    %18 = vector.broadcast %cst_7 : f32 to vector<4x512xf32>
    %19 = arith.mulf %18, %17 : vector<4x512xf32>
    %20 = arith.mulf %19, %5 : vector<4x512xf32>
    %21 = arith.mulf %0, %13 : vector<4x512xf32>
    %22 = arith.addf %21, %20 : vector<4x512xf32>
    %23 = arith.mulf %1, %13 : vector<4x512xf32>
    %24 = arith.subf %0, %22 : vector<4x512xf32>
    %25 = arith.mulf %22, %24 : vector<4x512xf32>
    %26 = arith.addf %23, %25 : vector<4x512xf32>
    %cst_8 = arith.constant 0.000000e+00 : f32
    %27 = vector.broadcast %cst_8 : f32 to vector<4x512xf32>
    %28 = arith.maximumf %0, %27 : vector<4x512xf32>
    %c0_9 = arith.constant 0 : index
    %c0_10 = arith.constant 0 : index
    %29 = vector.load %arg3[%c0_9, %c0_10] : memref<4x512xf32, #tpu.memory_space<vmem>>, vector<4x512xf32>
    tpu.vector_store %arg3[%c0_9, %c0_10], %28 {strides = array<i32>} : memref<4x512xf32, #tpu.memory_space<vmem>>, vector<4x512xf32>,
    %cst_11 = arith.constant 0.000000e+00 : f32
    %30 = vector.broadcast %cst_11 : f32 to vector<4x512xf32>
    %31 = arith.maximumf %26, %30 : vector<4x512xf32>
    %c0_12 = arith.constant 0 : index
    %c0_13 = arith.constant 0 : index
    %32 = vector.load %arg4[%c0_12, %c0_13] : memref<4x512xf32, #tpu.memory_space<vmem>>, vector<4x512xf32>
    tpu.vector_store %arg4[%c0_12, %c0_13], %31 {strides = array<i32>} : memref<4x512xf32, #tpu.memory_space<vmem>>, vector<4x512xf32>,
    return
  }
  func.func @transform_0(%arg0: i32) -> (i32, i32) {
    %c0_i32 = arith.constant 0 : i32
    %c0_i32_0 = arith.constant 0 : i32
    return %arg0, %c0_i32 : i32, i32
  }
  func.func @transform_1(%arg0: i32) -> (i32, i32) {
    %c0_i32 = arith.constant 0 : i32
    %c0_i32_0 = arith.constant 0 : i32
    return %arg0, %c0_i32 : i32, i32
  }
  func.func @transform_2(%arg0: i32) -> (i32, i32) {
    %c0_i32 = arith.constant 0 : i32
    %c0_i32_0 = arith.constant 0 : i32
    return %arg0, %c0_i32 : i32, i32
  }
  func.func @transform_3(%arg0: i32) -> (i32, i32) {
    %c0_i32 = arith.constant 0 : i32
    %c0_i32_0 = arith.constant 0 : i32
    return %arg0, %c0_i32 : i32, i32
  }
}

</mosaic_0001>

<llo_original>
// kernel: tpu_custom_call.1
$region0: #{tpu_custom_call.1}
  #allocation0 [shape = 'u32[]', space=smem, size = 0x4, offset = 0x4, fixed_abs, tag = 'smem constant byte address 0x4 - core index']
  #allocation1 [shape = 'u32[144,128]{1,0:T(1,128)}', space=vmem, size = 0x12000, scoped, tag = 'internal scratch']
  %s0 = inlined_call_operand.hbm [shape: f32[4,512], index: 0, kind: input, shape index: {}]
  %s1 = inlined_call_operand.hbm [shape: f32[4,512], index: 1, kind: input, shape index: {}]
  %s2 = inlined_call_operand.hbm [shape: f32[4,512], index: 2, kind: output, shape index: {0}]
  %s3 = inlined_call_operand.hbm [shape: f32[4,512], index: 3, kind: output, shape index: {1}]
  %4 = xla_tuple %s2, %s3
  %s5 = sld [smem:[#allocation0]]
  $region34: #{tpu_custom_call.1} parent=0
    _
  %s7 = ssub.s32 1, %s5
  %s8 = scalar_select 0, %s7, %s5
  $region1: #{tpu_custom_call.1} parent=0
    #allocation2 [shape = 'u8[8192]{0}', space=vmem, size = 0x2000, scoped, tag = 'input window, operand 0, single buffered']
    #allocation3 [shape = 's32[1]{0}', space=sflag, size = 0x4, scoped, tag = 'scoped memory for tpu_custom_call.1']
    #allocation4 [shape = 's32[1]{0}', space=sflag, size = 0x4, scoped, tag = 'scoped memory for tpu_custom_call.1']
    #allocation5 [shape = 'u8[8192]{0}', space=vmem, size = 0x2000, scoped, tag = 'input window, operand 1, single buffered']
    #allocation6 [shape = 's32[1]{0}', space=sflag, size = 0x4, scoped, tag = 'scoped memory for tpu_custom_call.1']
    #allocation7 [shape = 'u8[8192]{0}', space=vmem, size = 0x2000, scoped, tag = 'output window, operand 0, single buffered']
    #allocation8 [shape = 'u8[8192]{0}', space=vmem, size = 0x2000, scoped, tag = 'output window, operand 1, single buffered']
    #allocation9 [shape = 's32[1]{0}', space=sflag, size = 0x4, scoped, tag = 'scoped memory for tpu_custom_call.1']
    %9 = vsyncpa [#allocation3], 0
    %10 = vsyncpa [#allocation6], 0
    %11 = vsyncpa [#allocation4], 0
    %12 = vsyncpa [#allocation9], 0
    // Predicated region
    $region2: #{tpu_custom_call.1} parent=1 // pred_check
      _
    $region3: #{tpu_custom_call.1} parent=1 // pred_check_branch
      %14 = sbr.rel (0) target = $region5
    $region4: #{tpu_custom_call.1} parent=1 // pred_region
      %s16 = ssub.s32 256, 256
      %17 = vsyncadd [#allocation3], %s16
      %s19 = sshll.u32 [#allocation2], 4
      %s20 = int_to_ptr.vmem [resolvable:$true] %s19
      %22 = dma.hbm_to_vmem [thread:$0]  %s0, 256, %s20, [#allocation3]
    $region5: #{tpu_custom_call.1} parent=1 // pred_fallthru
      _
    // Predicated region
    $region6: #{tpu_custom_call.1} parent=1 // pred_check
      _
    $region7: #{tpu_custom_call.1} parent=1 // pred_check_branch
      %24 = sbr.rel (0) target = $region9
    $region8: #{tpu_custom_call.1} parent=1 // pred_region
      %s26 = ssub.s32 256, 256
      %27 = vsyncadd [#allocation6], %s26
      %s29 = sshll.u32 [#allocation5], 4
      %s30 = int_to_ptr.vmem [resolvable:$true] %s29
      %32 = dma.hbm_to_vmem [thread:$0]  %s1, 256, %s30, [#allocation6]
    $region9: #{tpu_custom_call.1} parent=1 // pred_fallthru
      _
    // Predicated region
    $region10: #{tpu_custom_call.1} parent=1 // pred_check
      _
    $region11: #{tpu_custom_call.1} parent=1 // pred_check_branch
      %34 = sbr.rel (0) target = $region13
    $region12: #{tpu_custom_call.1} parent=1 // pred_region
      %35 = dma.done [#allocation3], 256
    $region13: #{tpu_custom_call.1} parent=1 // pred_fallthru
      _
    // Predicated region
    $region14: #{tpu_custom_call.1} parent=1 // pred_check
      _
    $region15: #{tpu_custom_call.1} parent=1 // pred_check_branch
      %37 = sbr.rel (0) target = $region17
    $region16: #{tpu_custom_call.1} parent=1 // pred_region
      %38 = dma.done [#allocation6], 256
    $region17: #{tpu_custom_call.1} parent=1 // pred_fallthru
      _
    %v39 = vld [vmem:[#allocation2] sm:$0xff]
    %v40 = vld [vmem:[#allocation2 + $0x8] sm:$0xff]
    %v41 = vld [vmem:[#allocation5] sm:$0xff]
    %v42 = vld [vmem:[#allocation5 + $0x8] sm:$0xff]
    %v43 = vadd.f32 %v41, 1e-08
    %v44 = vadd.f32 %v42, 1e-08
    %v45 = vrsqrt.pop %v43
    %v46 = vrsqrt.pop %v44
    %v47 = vmul.f32 %v43, %v45
    %v48 = vmul.f32 %v44, %v46
    %v49 = vmul.f32 %v39, %v45
    %v50 = vmul.f32 %v40, %v46
    %v51 = vmul.f32 %v49, 0.70710677
    %v52 = vmul.f32 %v50, 0.70710677
    %v53 = verf.f32.pop %v51
    %v54 = verf.f32.pop %v52
    %v55 = vadd.f32 %v53, 1.0
    %v56 = vadd.f32 %v54, 1.0
    %v57 = vmul.f32 %v55, 0.5
    %v58 = vmul.f32 %v56, 0.5
    %v59 = vmul.f32 %v51, %v51
    %v60 = vmul.f32 %v52, %v52
    %v61 = vsub.f32 0.0, %v59
    %v62 = vsub.f32 0.0, %v60
    %v63 = vmul.f32 %v61, 1.442695
    %v64 = vpow.pop %v63
    %v65 = vmul.f32 %v62, 1.442695
    %v66 = vpow.pop %v65
    %v67 = vmul.f32 %v64, 0.3989423
    %v68 = vmul.f32 %v66, 0.3989423
    %v69 = vmul.f32 %v67, %v47
    %v70 = vmul.f32 %v68, %v48
    %v71 = vmul.f32 %v39, %v57
    %v72 = vmul.f32 %v40, %v58
    %v73 = vadd.f32 %v71, %v69
    %v74 = vadd.f32 %v72, %v70
    %v75 = vmul.f32 %v41, %v57
    %v76 = vmul.f32 %v42, %v58
    %v77 = vsub.f32 %v39, %v73
    %v78 = vsub.f32 %v40, %v74
    %v79 = vmul.f32 %v73, %v77
    %v80 = vmul.f32 %v74, %v78
    %v81 = vadd.f32 %v75, %v79
    %v82 = vadd.f32 %v76, %v80
    %v83 = vmax.f32 %v39, 0.0
    %v84 = vmax.f32 %v40, 0.0
    %85 = vst [vmem:[#allocation7] sm:$0xff] %v83
    %86 = vst [vmem:[#allocation7 + $0x8] sm:$0xff] %v84
    %v87 = vmax.f32 %v81, 0.0
    %v88 = vmax.f32 %v82, 0.0
    %89 = vst [vmem:[#allocation8] sm:$0xff] %v87
    %90 = vst [vmem:[#allocation8 + $0x8] sm:$0xff] %v88
    // Predicated region
    $region18: #{tpu_custom_call.1} parent=1 // pred_check
      _
    $region19: #{tpu_custom_call.1} parent=1 // pred_check_branch
      %92 = sbr.rel (0) target = $region21
    $region20: #{tpu_custom_call.1} parent=1 // pred_region
      %s94 = ssub.s32 256, 256
      %95 = vsyncadd [#allocation4], %s94
      %s97 = sshll.u32 [#allocation7], 4
      %s98 = int_to_ptr.vmem [resolvable:$true] %s97
      %100 = dma.vmem_to_hbm [thread:$0]  %s98, 256, %s2, [#allocation4]
    $region21: #{tpu_custom_call.1} parent=1 // pred_fallthru
      _
    // Predicated region
    $region22: #{tpu_custom_call.1} parent=1 // pred_check
      _
    $region23: #{tpu_custom_call.1} parent=1 // pred_check_branch
      %102 = sbr.rel (0) target = $region25
    $region24: #{tpu_custom_call.1} parent=1 // pred_region
      %s104 = ssub.s32 256, 256
      %105 = vsyncadd [#allocation9], %s104
      %s107 = sshll.u32 [#allocation8], 4
      %s108 = int_to_ptr.vmem [resolvable:$true] %s107
      %110 = dma.vmem_to_hbm [thread:$0]  %s108, 256, %s3, [#allocation9]
    $region25: #{tpu_custom_call.1} parent=1 // pred_fallthru
      _
    // Predicated region
    $region26: #{tpu_custom_call.1} parent=1 // pred_check
      _
    $region27: #{tpu_custom_call.1} parent=1 // pred_check_branch
      %112 = sbr.rel (0) target = $region29
    $region28: #{tpu_custom_call.1} parent=1 // pred_region
      %113 = dma.done [#allocation4], 256
    $region29: #{tpu_custom_call.1} parent=1 // pred_fallthru
      _
    // Predicated region
    $region30: #{tpu_custom_call.1} parent=1 // pred_check
      _
    $region31: #{tpu_custom_call.1} parent=1 // pred_check_branch
      %115 = sbr.rel (0) target = $region33
    $region32: #{tpu_custom_call.1} parent=1 // pred_region
      %116 = dma.done [#allocation9], 256
    $region33: #{tpu_custom_call.1} parent=1 // pred_fallthru
      _
    %117 = vsyncpa [#allocation3], 1
    %118 = vsyncpa [#allocation6], 1
    %119 = vsyncpa [#allocation4], 1
    %120 = vsyncpa [#allocation9], 1

</llo_original>
